<compile_context>
chip_gen: v7x
topology: tpu7x:2x2x1
jax: 0.10.0
libtpu: 0.0.40
codegen_flags: <defaults>
</compile_context>

<pallas_src>
import functools
import math

import jax
import jax.numpy as jnp
from jax.experimental import pallas as pl
from jax.experimental.pallas import tpu as pltpu

# Make the pure-JAX reference use true f32 matmuls so the f32 correctness
# check compares like against like.
jax.config.update("jax_default_matmul_precision", "highest")


# ----------------------------------------------------------------------------
# helpers
# ----------------------------------------------------------------------------
def _cdiv(a, b):
    return (a + b - 1) // b


def _round_up(x, m):
    return _cdiv(x, m) * m


def _bytes(shape, dtype):
    n = 1
    for s in shape:
        n *= int(s)
    return n * jnp.dtype(dtype).itemsize


def _vmem_cap_bytes():
    try:
        cap = getattr(pltpu.get_tpu_info(), "vmem_capacity_bytes", None)
        if cap:
            return int(cap)
    except Exception:
        pass
    return 64 * 1024 * 1024          # conservative fallback (v7x per-core VMEM)


def _vmem_limit(need_bytes):
    # Cap at ~70% of physical VMEM (headroom for Mosaic internal scratch).
    hi = int(_vmem_cap_bytes() * 0.7)
    return int(min(max(int(need_bytes) + (2 << 20), 16 * 1024 * 1024), hi))


def _row_tile(M, itemsize, *, target_steps=8, min_rows=256, tm_max=1024):
    """Row tile: big tiles for HBM roofline, but multiple grid steps when M is
    large and >= 2 steps whenever possible (v7x 2-TC sharding); sublane
    aligned (16 rows for bf16 packing, 8 for f32)."""
    align = 16 if itemsize < 4 else 8
    tm = _round_up(max(_cdiv(M, target_steps), 1), align)
    tm = max(tm, min_rows)
    tm = min(tm, tm_max, _round_up(M, align))
    if M > align:                    # guarantee >= 2 parallel grid steps
        tm = min(tm, _round_up(_cdiv(M, 2), align))
    return max(tm, align)


def _ln_f32(x, gamma, beta, eps):
    mean = jnp.mean(x, axis=-1, keepdims=True)
    cen = x - mean
    var = jnp.mean(cen * cen, axis=-1, keepdims=True)
    return cen * jax.lax.rsqrt(var + eps) * gamma + beta


# ----------------------------------------------------------------------------
# kernels
# ----------------------------------------------------------------------------
def _linear_kernel(*refs, nk, has_bias, has_residual, has_ln, eps):
    """o = [LN](x @ w [+ bias] [+ residual]); optional K-tiled accumulation."""
    refs = list(refs)
    x_ref = refs.pop(0)
    w_ref = refs.pop(0)
    b_ref = refs.pop(0) if has_bias else None
    r_ref = refs.pop(0) if has_residual else None
    if has_ln:
        g_ref = refs.pop(0)
        be_ref = refs.pop(0)
    o_ref = refs.pop(0)
    acc_ref = refs.pop(0)

    k = pl.program_id(1)

    @pl.when(k == 0)
    def _init():
        acc_ref[...] = jnp.zeros_like(acc_ref)

    acc_ref[...] += jnp.dot(x_ref[...], w_ref[...],
                            preferred_element_type=jnp.float32)

    @pl.when(k == nk - 1)
    def _epilogue():
        acc = acc_ref[...]
        if has_bias:
            acc = acc + b_ref[...].astype(jnp.float32)
        if has_residual:
            acc = acc + r_ref[...].astype(jnp.float32)
        if has_ln:
            acc = _ln_f32(acc, g_ref[...].astype(jnp.float32),
                          be_ref[...].astype(jnp.float32), eps)
        o_ref[...] = acc.astype(o_ref.dtype)


def _ffn_kernel(x_ref, w1_ref, b1_ref, w2_ref, b2_ref, g_ref, be_ref, o_ref,
                *, eps):
    """o = LN(w2(relu(x @ w1 + b1)) + b2 + x)  -- fully fused (d_ff never
    leaves VMEM, residual + LayerNorm in the epilogue)."""
    x = x_ref[...]
    h = jnp.dot(x, w1_ref[...], preferred_element_type=jnp.float32)
    h = jnp.maximum(h + b1_ref[...].astype(jnp.float32), 0.0)
    y = jnp.dot(h.astype(w2_ref.dtype), w2_ref[...],
                preferred_element_type=jnp.float32)
    y = y + b2_ref[...].astype(jnp.float32) + x.astype(jnp.float32)
    y = _ln_f32(y, g_ref[...].astype(jnp.float32),
                be_ref[...].astype(jnp.float32), eps)
    o_ref[...] = y.astype(o_ref.dtype)


def _embed_kernel(x_ref, w_ref, b_ref, pe_ref, g_ref, be_ref, o_ref, *, eps):
    """o = LN(x @ W_emb + b_emb + PE)  (Embbeding + pos. encoding + eval-mode
    dropout identity + LayerNorm), one batch element per grid step."""
    h = jnp.dot(x_ref[0], w_ref[...], preferred_element_type=jnp.float32)
    h = h + b_ref[...].astype(jnp.float32) + pe_ref[...].astype(jnp.float32)
    h = _ln_f32(h, g_ref[...].astype(jnp.float32),
                be_ref[...].astype(jnp.float32), eps)
    o_ref[0] = h.astype(o_ref.dtype)


def _attention_kernel(*refs, n_head, d_k, d_v, scale, store_attn):
    """One batch element per grid step; all heads handled with static lane
    slices of the fused QKV block; output heads concatenated lane-dense."""
    refs = list(refs)
    qkv_ref = refs.pop(0)
    o_ref = refs.pop(0)
    attn_ref = refs.pop(0) if store_attn else None

    qkv = qkv_ref[0]                                  # (L, 2*H*dk + H*dv)
    k_off = n_head * d_k
    v_off = 2 * n_head * d_k
    outs = []
    for h in range(n_head):
        q = qkv[:, h * d_k:(h + 1) * d_k]
        k = qkv[:, k_off + h * d_k:k_off + (h + 1) * d_k]
        v = qkv[:, v_off + h * d_v:v_off + (h + 1) * d_v]
        # scores = (q @ k^T) * scale  (scale applied to the f32 accumulator)
        s = jax.lax.dot_general(q, k, (((1,), (1,)), ((), ())),
                                preferred_element_type=jnp.float32) * scale
        m = jnp.max(s, axis=-1, keepdims=True)
        e = jnp.exp(s - m)                            # softmax stats in f32
        inv = 1.0 / jnp.sum(e, axis=-1, keepdims=True)
        p = e * inv
        if store_attn:
            attn_ref[0, h] = p.astype(attn_ref.dtype)
        outs.append(jnp.dot(p.astype(v.dtype), v,
                            preferred_element_type=jnp.float32))
    o_ref[0] = jnp.concatenate(outs, axis=-1).astype(o_ref.dtype)


# ----------------------------------------------------------------------------
# pallas_call wrappers
# ----------------------------------------------------------------------------
def linear_pallas(x2d, w, bias=None, residual=None, ln=None, *,
                  out_dtype=None, eps=1e-6, tm_max=1024, tk_max=2048,
                  target_steps=8, min_rows=256):
    """Row-tiled (parallel) + optionally K-tiled (arbitrary) matmul with an
    optional fused bias / residual-add / LayerNorm epilogue.

    x2d: (M, K); w: (K, N) pre-transposed; bias: (N,) f32; residual: (M, N);
    ln: (gamma, beta) f32.  Tiny N is padded to 128 lanes (unmasked stores).
    """
    M, K = x2d.shape
    Kw, N = w.shape
    assert Kw == K
    out_dtype = out_dtype or x2d.dtype

    N_pad = max(_round_up(N, 128), 128)
    if N_pad != N:
        assert residual is None and ln is None
        w = jnp.pad(w, ((0, 0), (0, N_pad - N)))
        if bias is not None:
            bias = jnp.pad(bias, (0, N_pad - N))

    itemsize = jnp.dtype(x2d.dtype).itemsize
    tm = _row_tile(M, itemsize, target_steps=target_steps,
                   min_rows=min_rows, tm_max=tm_max)

    # K (reduction) tiling for long-K linears (keeps VMEM bounded on v7x).
    if K <= tk_max:
        tk, nk = K, 1
    else:
        tk = 0
        for cand in range((tk_max // 128) * 128, 0, -128):
            if K % cand == 0:
                tk = cand
                break
        if tk == 0:
            tk, nk = K, 1
        else:
            nk = K // tk

    # Only pad rows in the degenerate M < tile case (e.g. classifier, M=B);
    # ragged last blocks for M > tile are handled by Pallas masked stores.
    if M < tm:
        x2d = jnp.pad(x2d, ((0, tm - M), (0, 0)))
        if residual is not None:
            residual = jnp.pad(residual, ((0, tm - M), (0, 0)))
        M_eff = tm
    else:
        M_eff = M
    nm = _cdiv(M_eff, tm)

    in_specs = [pl.BlockSpec((tm, tk), lambda i, k: (i, k)),
                pl.BlockSpec((tk, N_pad), lambda i, k: (k, 0))]
    args = [x2d, w]
    if bias is not None:
        in_specs.append(pl.BlockSpec((1, N_pad), lambda i, k: (0, 0)))
        args.append(bias.reshape(1, N_pad))
    if residual is not None:
        in_specs.append(pl.BlockSpec((tm, N_pad), lambda i, k: (i, 0)))
        args.append(residual)
    if ln is not None:
        gamma, beta = ln
        in_specs.append(pl.BlockSpec((1, N_pad), lambda i, k: (0, 0)))
        in_specs.append(pl.BlockSpec((1, N_pad), lambda i, k: (0, 0)))
        args.append(gamma.reshape(1, N_pad))
        args.append(beta.reshape(1, N_pad))

    # VMEM budget: count every input/output double-buffered (weights too).
    need = 2 * (_bytes((tm, tk), x2d.dtype) + _bytes((tk, N_pad), w.dtype)
                + _bytes((tm, N_pad), out_dtype))
    if bias is not None:
        need += 2 * _bytes((1, N_pad), bias.dtype)
    if residual is not None:
        need += 2 * _bytes((tm, N_pad), residual.dtype)
    if ln is not None:
        need += 4 * _bytes((1, N_pad), jnp.float32)
    need += _bytes((tm, N_pad), jnp.float32)          # accumulator scratch

    out = pl.pallas_call(
        functools.partial(_linear_kernel, nk=nk,
                          has_bias=bias is not None,
                          has_residual=residual is not None,
                          has_ln=ln is not None, eps=eps),
        out_shape=jax.ShapeDtypeStruct((M_eff, N_pad), out_dtype),
        grid_spec=pltpu.PrefetchScalarGridSpec(
            num_scalar_prefetch=0,
            grid=(nm, nk),
            in_specs=in_specs,
            out_specs=pl.BlockSpec((tm, N_pad), lambda i, k: (i, 0)),
            scratch_shapes=[pltpu.VMEM((tm, N_pad), jnp.float32)]),
        compiler_params=pltpu.CompilerParams(
            dimension_semantics=("parallel", "arbitrary"),
            vmem_limit_bytes=_vmem_limit(need)),
        cost_estimate=pl.CostEstimate(
            flops=2 * M_eff * K * N_pad,
            transcendentals=0,
            bytes_accessed=(_bytes((M, K), x2d.dtype)
                            + _bytes((K, N_pad), w.dtype)
                            + _bytes((M, N_pad), out_dtype))),
    )(*args)

    if M_eff != M:
        out = out[:M]
    if N_pad != N:
        out = out[:, :N]
    return out


def ffn_pallas(x2d, w1, b1, w2, b2, gamma, beta, *, out_dtype=None, eps=1e-6,
               tm_max=512, target_steps=8, min_rows=256):
    """Fused LN(w2(relu(x @ w1 + b1)) + b2 + x).  x2d: (M, D)."""
    M, D = x2d.shape
    Dh = w1.shape[1]
    out_dtype = out_dtype or x2d.dtype
    itemsize = jnp.dtype(x2d.dtype).itemsize
    tm = _row_tile(M, itemsize, target_steps=target_steps,
                   min_rows=min_rows, tm_max=tm_max)
    if M < tm:
        x_in = jnp.pad(x2d, ((0, tm - M), (0, 0)))
        M_eff = tm
    else:
        x_in, M_eff = x2d, M
    nm = _cdiv(M_eff, tm)

    need = (2 * (_bytes((tm, D), x2d.dtype) + _bytes((D, Dh), w1.dtype)
                 + _bytes((Dh, D), w2.dtype) + _bytes((1, Dh), jnp.float32)
                 + 3 * _bytes((1, D), jnp.float32)
                 + _bytes((tm, D), out_dtype))
            + 2 * _bytes((tm, Dh), jnp.float32))      # in-kernel intermediate

    out = pl.pallas_call(
        functools.partial(_ffn_kernel, eps=eps),
        out_shape=jax.ShapeDtypeStruct((M_eff, D), out_dtype),
        grid_spec=pltpu.PrefetchScalarGridSpec(
            num_scalar_prefetch=0,
            grid=(nm,),
            in_specs=[
                pl.BlockSpec((tm, D), lambda i: (i, 0)),
                pl.BlockSpec((D, Dh), lambda i: (0, 0)),
                pl.BlockSpec((1, Dh), lambda i: (0, 0)),
                pl.BlockSpec((Dh, D), lambda i: (0, 0)),
                pl.BlockSpec((1, D), lambda i: (0, 0)),
                pl.BlockSpec((1, D), lambda i: (0, 0)),
                pl.BlockSpec((1, D), lambda i: (0, 0)),
            ],
            out_specs=pl.BlockSpec((tm, D), lambda i: (i, 0))),
        compiler_params=pltpu.CompilerParams(
            dimension_semantics=("parallel",),
            vmem_limit_bytes=_vmem_limit(need)),
        cost_estimate=pl.CostEstimate(
            flops=4 * M_eff * D * Dh + 12 * M_eff * D,
            transcendentals=0,
            bytes_accessed=(_bytes((M, D), x2d.dtype)
                            + _bytes((D, Dh), w1.dtype)
                            + _bytes((Dh, D), w2.dtype)
                            + _bytes((M, D), out_dtype))),
    )(x_in, w1, b1.reshape(1, Dh), w2, b2.reshape(1, D),
      gamma.reshape(1, D), beta.reshape(1, D))
    return out[:M] if M_eff != M else out


def embed_pallas(x, w, b, pe, gamma, beta, *, out_dtype, eps=1e-6):
    """Fused Embbeding (pointwise matmul) + PE add + LN.  x: (B, L, F)."""
    B, L, F = x.shape
    D = w.shape[1]
    pe_l = pe[:L]
    need = 2 * (_bytes((L, F), x.dtype) + _bytes((F, D), w.dtype)
                + _bytes((L, D), pe_l.dtype)
                + 3 * _bytes((1, D), jnp.float32)
                + _bytes((L, D), out_dtype))
    out = pl.pallas_call(
        functools.partial(_embed_kernel, eps=eps),
        out_shape=jax.ShapeDtypeStruct((B, L, D), out_dtype),
        grid_spec=pltpu.PrefetchScalarGridSpec(
            num_scalar_prefetch=0,
            grid=(B,),
            in_specs=[pl.BlockSpec((1, L, F), lambda i: (i, 0, 0)),
                      pl.BlockSpec((F, D), lambda i: (0, 0)),
                      pl.BlockSpec((1, D), lambda i: (0, 0)),
                      pl.BlockSpec((L, D), lambda i: (0, 0)),
                      pl.BlockSpec((1, D), lambda i: (0, 0)),
                      pl.BlockSpec((1, D), lambda i: (0, 0))],
            out_specs=pl.BlockSpec((1, L, D), lambda i: (i, 0, 0))),
        compiler_params=pltpu.CompilerParams(
            dimension_semantics=("parallel",),
            vmem_limit_bytes=_vmem_limit(need)),
        cost_estimate=pl.CostEstimate(
            flops=2 * B * L * F * D + 12 * B * L * D,
            transcendentals=0,
            bytes_accessed=(_bytes((B, L, F), x.dtype) + _bytes((F, D), w.dtype)
                            + _bytes((L, D), pe_l.dtype)
                            + _bytes((B, L, D), out_dtype))),
    )(x, w, b.reshape(1, D), pe_l, gamma.reshape(1, D), beta.reshape(1, D))
    return out.reshape(B * L, D)


def attention_pallas(qkv, *, batch, seq_len, n_head, d_k, d_v, out_dtype,
                     return_attn=True):
    """qkv: (B*L, 2*H*dk + H*dv) fused projection (per (b, l) row).

    Returns (o, attn): o is (B*L, H*dv) with heads concatenated along lanes;
    attn is (B, H, L, L) f32 (or None when return_attn=False).
    """
    B, L, H = batch, seq_len, n_head
    E = qkv.shape[1]
    qkv3 = qkv.reshape(B, L, E)
    scale = 1.0 / math.sqrt(d_k)

    out_shape = [jax.ShapeDtypeStruct((B, L, H * d_v), out_dtype)]
    out_specs = [pl.BlockSpec((1, L, H * d_v), lambda b: (b, 0, 0))]
    if return_attn:
        out_shape.append(jax.ShapeDtypeStruct((B, H, L, L), jnp.float32))
        out_specs.append(pl.BlockSpec((1, H, L, L), lambda b: (b, 0, 0, 0)))

    need = 2 * (_bytes((L, E), qkv.dtype) + _bytes((L, H * d_v), out_dtype))
    if return_attn:
        need += 2 * _bytes((H, L, L), jnp.float32)
    need += 6 * _bytes((L, L), jnp.float32)           # per-head temporaries

    res = pl.pallas_call(
        functools.partial(_attention_kernel, n_head=H, d_k=d_k, d_v=d_v,
                          scale=scale, store_attn=return_attn),
        out_shape=tuple(out_shape),
        grid_spec=pltpu.PrefetchScalarGridSpec(
            num_scalar_prefetch=0,
            grid=(B,),
            in_specs=[pl.BlockSpec((1, L, E), lambda b: (b, 0, 0))],
            out_specs=tuple(out_specs)),
        compiler_params=pltpu.CompilerParams(
            dimension_semantics=("parallel",),
            vmem_limit_bytes=_vmem_limit(need)),
        cost_estimate=pl.CostEstimate(
            flops=2 * B * H * L * L * (d_k + d_v),
            transcendentals=B * H * L * L,
            bytes_accessed=(_bytes((B, L, E), qkv.dtype)
                            + _bytes((B, L, H * d_v), out_dtype)
                            + (_bytes((B, H, L, L), jnp.float32)
                               if return_attn else 0))),
    )(qkv3)

    if return_attn:
        o3, attn = res
    else:
        o3 = res[0] if isinstance(res, (tuple, list)) else res
        attn = None
    return o3.reshape(B * L, H * d_v), attn


# ----------------------------------------------------------------------------
# Encoder forward (Pallas) and pure-JAX reference
# ----------------------------------------------------------------------------
def encoder_forward_pallas(x, params, *, compute_dtype=jnp.bfloat16,
                           return_attn=True):
    """x: (B, L, num_features) -> (logits (B, n_class), [attn (B,H,L,L), ...])."""
    B, L, F = x.shape
    D, H = params["d_model"], params["n_head"]
    dk, dv = params["d_k"], params["d_v"]
    cd = compute_dtype

    # Embbeding + positional encoding + dropout(identity) + LayerNorm.
    # The F=4-wide embedding matmul is negligible; keep it f32.
    h = embed_pallas(x.astype(jnp.float32), params["emb_w"].astype(jnp.float32),
                     params["emb_b"], params["pe"],
                     params["ln0_g"], params["ln0_b"], out_dtype=cd)   # (M, D)

    attns = []
    for lyr in params["layers"]:
        # fused Q/K/V projection (no bias in the module)
        qkv = linear_pallas(h, lyr["w_qkv"].astype(cd), out_dtype=cd)
        o2d, attn = attention_pallas(qkv, batch=B, seq_len=L, n_head=H,
                                     d_k=dk, d_v=dv, out_dtype=cd,
                                     return_attn=return_attn)
        if return_attn:
            attns.append(attn)
        # output projection + dropout(identity) + residual + LN (fused epilogue)
        h = linear_pallas(o2d, lyr["w_o"].astype(cd), residual=h,
                          ln=(lyr["ln1_g"], lyr["ln1_b"]), out_dtype=cd)
        # position-wise FFN + dropout(identity) + residual + LN (fully fused)
        h = ffn_pallas(h, lyr["w1"].astype(cd), lyr["b1"],
                       lyr["w2"].astype(cd), lyr["b2"],
                       lyr["ln2_g"], lyr["ln2_b"], out_dtype=cd)

    logits = linear_pallas(h.reshape(B, L * D), params["fc_w"].astype(cd),
                           bias=params["fc_b"], out_dtype=jnp.float32)
    return logits, attns


def _ln_ref(x, g, b, eps=1e-6):
    mean = jnp.mean(x, axis=-1, keepdims=True)
    var = jnp.mean(jnp.square(x - mean), axis=-1, keepdims=True)
    return (x - mean) * jax.lax.rsqrt(var + eps) * g + b


def encoder_forward_ref(x, params):
    B, L, F = x.shape
    D, H = params["d_model"], params["n_head"]
    dk, dv = params["d_k"], params["d_v"]

    h = jnp.einsum("blf,fd->bld", x, params["emb_w"]) + params["emb_b"]
    h = h + params["pe"][:L][None, :, :]
    h = _ln_ref(h, params["ln0_g"], params["ln0_b"])

    attns = []
    for lyr in params["layers"]:
        residual = h
        qkv = jnp.einsum("bld,de->ble", h, lyr["w_qkv"])
        q = qkv[..., :H * dk].reshape(B, L, H, dk).transpose(0, 2, 1, 3)
        k = qkv[..., H * dk:2 * H * dk].reshape(B, L, H, dk).transpose(0, 2, 1, 3)
        v = qkv[..., 2 * H * dk:].reshape(B, L, H, dv).transpose(0, 2, 1, 3)
        scale = 1.0 / math.sqrt(dk)
        s = jnp.einsum("bhqd,bhkd->bhqk", q * scale, k)
        attn = jax.nn.softmax(s, axis=-1)
        o = jnp.einsum("bhqk,bhkd->bhqd", attn, v)
        o = o.transpose(0, 2, 1, 3).reshape(B, L, H * dv)
        o = jnp.einsum("ble,ed->bld", o, lyr["w_o"])
        h = _ln_ref(o + residual, lyr["ln1_g"], lyr["ln1_b"])
        attns.append(attn)

        residual = h
        y = jnp.maximum(jnp.einsum("bld,df->blf", h, lyr["w1"]) + lyr["b1"], 0.0)
        y = jnp.einsum("blf,fd->bld", y, lyr["w2"]) + lyr["b2"]
        h = _ln_ref(y + residual, lyr["ln2_g"], lyr["ln2_b"])

    logits = h.reshape(B, L * D) @ params["fc_w"] + params["fc_b"]
    return logits, attns


# ----------------------------------------------------------------------------
# parameter construction
# ----------------------------------------------------------------------------
def make_pe(max_len, d_model):
    position = jnp.arange(max_len, dtype=jnp.float32)[:, None]
    div_term = jnp.exp(jnp.arange(0, d_model, 2, dtype=jnp.float32)
                       * (-math.log(10000.0) / d_model))
    pe = jnp.zeros((max_len, d_model), jnp.float32)
    pe = pe.at[:, 0::2].set(jnp.sin(position * div_term))
    pe = pe.at[:, 1::2].set(jnp.cos(position * div_term))
    return pe


def init_params(key, cfg):
    F, D, H = cfg["num_features"], cfg["d_model"], cfg["n_head"]
    dk, dv, d_ff = cfg["d_k"], cfg["d_v"], cfg["d_ff"]
    L, C, n_layers = cfg["seq_len"], cfg["n_class"], cfg["n_layers"]
    ks = iter(jax.random.split(key, 8 + 12 * n_layers))

    def w(fan_in, shape):
        return jax.random.normal(next(ks), shape, jnp.float32) / math.sqrt(fan_in)

    params = {
        "d_model": D, "n_head": H, "d_k": dk, "d_v": dv,
        # weights stored pre-transposed (K, N): no per-call transpose.
        "emb_w": w(F, (F, D)),
        "emb_b": w(F, (D,)),
        "pe": make_pe(cfg["max_len"], D),
        "ln0_g": jnp.ones((D,), jnp.float32) + 0.1 * jax.random.normal(next(ks), (D,), jnp.float32),
        "ln0_b": 0.1 * jax.random.normal(next(ks), (D,), jnp.float32),
        "fc_w": w(L * D, (L * D, C)),
        "fc_b": w(L * D, (C,)),
        "layers": [],
    }
    for _ in range(n_layers):
        params["layers"].append({
            "w_qkv": w(D, (D, H * dk * 2 + H * dv)),   # fused [W_Q | W_K | W_V]^T
            "w_o": w(H * dv, (H * dv, D)),
            "ln1_g": jnp.ones((D,), jnp.float32) + 0.1 * jax.random.normal(next(ks), (D,), jnp.float32),
            "ln1_b": 0.1 * jax.random.normal(next(ks), (D,), jnp.float32),
            "w1": w(D, (D, d_ff)),
            "b1": w(D, (d_ff,)),
            "w2": w(d_ff, (d_ff, D)),
            "b2": w(d_ff, (D,)),
            "ln2_g": jnp.ones((D,), jnp.float32) + 0.1 * jax.random.normal(next(ks), (D,), jnp.float32),
            "ln2_b": 0.1 * jax.random.normal(next(ks), (D,), jnp.float32),
        })
    return params


def cast_params(params, dtype):
    """Cast the large matmul weights to `dtype`; biases, LayerNorm params,
    the positional encoding and the tiny F=4 embedding weight stay f32."""
    mm_layer = {"w_qkv", "w_o", "w1", "w2"}
    out = dict(params)
    out["fc_w"] = params["fc_w"].astype(dtype)
    out["layers"] = [
        {k: (v.astype(dtype) if k in mm_layer else v) for k, v in lyr.items()}
        for lyr in params["layers"]
    ]
    return out


# ----------------------------------------------------------------------------
# demo / correctness check
# ----------------------------------------------------------------------------
if __name__ == "__main__":
    cfg = dict(num_features=4, d_model=128, n_head=4, d_k=32, d_v=32,
               d_ff=256, n_layers=2, seq_len=8, n_class=2, max_len=64)
    B, L, F = 2, cfg["seq_len"], cfg["num_features"]

    key = jax.random.PRNGKey(0)
    kp, kx = jax.random.split(key)
    params = init_params(kp, cfg)
    x = jax.random.normal(kx, (B, L, F), jnp.float32)

    logits_ref, attns_ref = encoder_forward_ref(x, params)

    # --- f32 path: tight correctness check against the pure-JAX reference ---
    logits32, attns32 = encoder_forward_pallas(x, params,
                                               compute_dtype=jnp.float32)
    logits32 = jax.block_until_ready(logits32)
    assert logits32.shape == (B, cfg["n_class"])
    assert bool(jnp.allclose(logits32, logits_ref, atol=1e-3, rtol=1e-3)), (
        f"f32 logits max abs diff "
        f"{float(jnp.max(jnp.abs(logits32 - logits_ref)))}")
    for a, a_ref in zip(attns32, attns_ref):
        assert a.shape == (B, cfg["n_head"], L, L)
        assert bool(jnp.allclose(a, a_ref, atol=1e-3, rtol=1e-3)), (
            f"f32 attn max abs diff {float(jnp.max(jnp.abs(a - a_ref)))}")

    # --- bf16 path (production config): halved HBM traffic + native bf16 MXU,
    # f32 accumulation / LN / softmax statistics; bf16-appropriate tolerance.
    params_bf16 = cast_params(params, jnp.bfloat16)
    logits16, attns16 = encoder_forward_pallas(x, params_bf16,
                                               compute_dtype=jnp.bfloat16)
    logits16 = jax.block_until_ready(logits16)
    assert logits16.shape == (B, cfg["n_class"])
    bf16_diff = float(jnp.max(jnp.abs(logits16.astype(jnp.float32) - logits_ref)))
    assert bf16_diff < 0.5, f"bf16 logits max abs diff {bf16_diff}"

    print("KERNEL_OK")
</pallas_src>

<mosaic_0001>
module attributes {stable_mosaic.version = 11 : i64} {
  func.func @_embed_kernel(%arg0: i32, %arg1: memref<1x8x4xf32, #tpu.memory_space<vmem>>, %arg2: memref<4x128xf32, #tpu.memory_space<vmem>>, %arg3: memref<1x128xf32, #tpu.memory_space<vmem>>, %arg4: memref<8x128xf32, #tpu.memory_space<vmem>>, %arg5: memref<1x128xf32, #tpu.memory_space<vmem>>, %arg6: memref<1x128xf32, #tpu.memory_space<vmem>>, %arg7: memref<1x8x128xf32, #tpu.memory_space<vmem>>) attributes {dimension_semantics = [#tpu.dimension_semantics<parallel>], iteration_bounds = array<i64: 2>, scalar_prefetch = 0 : i64, scratch_operands = 0 : i64, tpu.core_type = #tpu.core_type<tc>, window_params = [{transform_indices = @transform_0, window_bounds = array<i64: 1, 8, 4>}, {pipeline_mode = #tpu.pipeline_mode<synchronous>, transform_indices = @transform_1, window_bounds = array<i64: 4, 128>}, {pipeline_mode = #tpu.pipeline_mode<synchronous>, transform_indices = @transform_2, window_bounds = array<i64: 1, 128>}, {pipeline_mode = #tpu.pipeline_mode<synchronous>, transform_indices = @transform_3, window_bounds = array<i64: 8, 128>}, {pipeline_mode = #tpu.pipeline_mode<synchronous>, transform_indices = @transform_4, window_bounds = array<i64: 1, 128>}, {pipeline_mode = #tpu.pipeline_mode<synchronous>, transform_indices = @transform_5, window_bounds = array<i64: 1, 128>}, {transform_indices = @transform_6, window_bounds = array<i64: 1, 8, 128>}]} {
    %c0 = arith.constant 0 : index
    %c0_0 = arith.constant 0 : index
    %c0_1 = arith.constant 0 : index
    %0 = vector.load %arg1[%c0, %c0_0, %c0_1] : memref<1x8x4xf32, #tpu.memory_space<vmem>>, vector<1x8x4xf32>
    %1 = vector.shape_cast %0 : vector<1x8x4xf32> to vector<8x4xf32>
    %c0_2 = arith.constant 0 : index
    %c0_3 = arith.constant 0 : index
    %2 = vector.load %arg2[%c0_2, %c0_3] : memref<4x128xf32, #tpu.memory_space<vmem>>, vector<4x128xf32>
    %cst = arith.constant dense<0.000000e+00> : vector<8x128xf32>
    %3 = tpu.matmul %1, %2, %cst {dimension_numbers = #tpu.dot_dimension_numbers<[1], [0], [0], [1], [0, 0, 1, 1], [], []>, precision = #tpu.contract_precision<fp32>} : vector<8x4xf32>, vector<4x128xf32>, vector<8x128xf32> -> vector<8x128xf32>
    %c0_4 = arith.constant 0 : index
    %c0_5 = arith.constant 0 : index
    %4 = vector.load %arg3[%c0_4, %c0_5] : memref<1x128xf32, #tpu.memory_space<vmem>>, vector<1x128xf32>
    %5 = vector.broadcast %4 : vector<1x128xf32> to vector<8x128xf32>
    %6 = arith.addf %3, %5 : vector<8x128xf32>
    %c0_6 = arith.constant 0 : index
    %c0_7 = arith.constant 0 : index
    %7 = vector.load %arg4[%c0_6, %c0_7] : memref<8x128xf32, #tpu.memory_space<vmem>>, vector<8x128xf32>
    %8 = arith.addf %6, %7 : vector<8x128xf32>
    %c0_8 = arith.constant 0 : index
    %c0_9 = arith.constant 0 : index
    %9 = vector.load %arg5[%c0_8, %c0_9] : memref<1x128xf32, #tpu.memory_space<vmem>>, vector<1x128xf32>
    %c0_10 = arith.constant 0 : index
    %c0_11 = arith.constant 0 : index
    %10 = vector.load %arg6[%c0_10, %c0_11] : memref<1x128xf32, #tpu.memory_space<vmem>>, vector<1x128xf32>
    %cst_12 = arith.constant dense<0.000000e+00> : vector<8xf32>
    %11 = vector.multi_reduction <add>, %8, %cst_12 [1] : vector<8x128xf32> to vector<8xf32>
    %12 = vector.shape_cast %11 : vector<8xf32> to vector<8x1xf32>
    %cst_13 = arith.constant 1.280000e+02 : f32
    %13 = vector.broadcast %cst_13 : f32 to vector<8x1xf32>
    %14 = arith.divf %12, %13 : vector<8x1xf32>
    %15 = vector.broadcast %14 : vector<8x1xf32> to vector<8x128xf32>
    %16 = arith.subf %8, %15 : vector<8x128xf32>
    %17 = arith.mulf %16, %16 : vector<8x128xf32>
    %cst_14 = arith.constant dense<0.000000e+00> : vector<8xf32>
    %18 = vector.multi_reduction <add>, %17, %cst_14 [1] : vector<8x128xf32> to vector<8xf32>
    %19 = vector.shape_cast %18 : vector<8xf32> to vector<8x1xf32>
    %cst_15 = arith.constant 1.280000e+02 : f32
    %20 = vector.broadcast %cst_15 : f32 to vector<8x1xf32>
    %21 = arith.divf %19, %20 : vector<8x1xf32>
    %cst_16 = arith.constant 9.99999997E-7 : f32
    %22 = vector.broadcast %cst_16 : f32 to vector<8x1xf32>
    %23 = arith.addf %21, %22 : vector<8x1xf32>
    %24 = math.rsqrt %23 : vector<8x1xf32>
    %25 = vector.broadcast %24 : vector<8x1xf32> to vector<8x128xf32>
    %26 = arith.mulf %16, %25 : vector<8x128xf32>
    %27 = vector.broadcast %9 : vector<1x128xf32> to vector<8x128xf32>
    %28 = arith.mulf %26, %27 : vector<8x128xf32>
    %29 = vector.broadcast %10 : vector<1x128xf32> to vector<8x128xf32>
    %30 = arith.addf %28, %29 : vector<8x128xf32>
    %c0_17 = arith.constant 0 : index
    %c0_18 = arith.constant 0 : index
    %c0_19 = arith.constant 0 : index
    %31 = vector.load %arg7[%c0_17, %c0_18, %c0_19] : memref<1x8x128xf32, #tpu.memory_space<vmem>>, vector<1x8x128xf32>
    %32 = vector.shape_cast %31 : vector<1x8x128xf32> to vector<8x128xf32>
    %33 = vector.shape_cast %30 : vector<8x128xf32> to vector<1x8x128xf32>
    tpu.vector_store %arg7[%c0_17, %c0_18, %c0_19], %33 {strides = array<i32>} : memref<1x8x128xf32, #tpu.memory_space<vmem>>, vector<1x8x128xf32>,
    return
  }
  func.func @transform_0(%arg0: i32) -> (i32, i32, i32) {
    %c0_i32 = arith.constant 0 : i32
    %c0_i32_0 = arith.constant 0 : i32
    %c0_i32_1 = arith.constant 0 : i32
    return %arg0, %c0_i32, %c0_i32_0 : i32, i32, i32
  }
  func.func @transform_1(%arg0: i32) -> (i32, i32) {
    %c0_i32 = arith.constant 0 : i32
    %c0_i32_0 = arith.constant 0 : i32
    %c0_i32_1 = arith.constant 0 : i32
    return %c0_i32, %c0_i32_0 : i32, i32
  }
  func.func @transform_2(%arg0: i32) -> (i32, i32) {
    %c0_i32 = arith.constant 0 : i32
    %c0_i32_0 = arith.constant 0 : i32
    %c0_i32_1 = arith.constant 0 : i32
    return %c0_i32, %c0_i32_0 : i32, i32
  }
  func.func @transform_3(%arg0: i32) -> (i32, i32) {
    %c0_i32 = arith.constant 0 : i32
    %c0_i32_0 = arith.constant 0 : i32
    %c0_i32_1 = arith.constant 0 : i32
    return %c0_i32, %c0_i32_0 : i32, i32
  }
  func.func @transform_4(%arg0: i32) -> (i32, i32) {
    %c0_i32 = arith.constant 0 : i32
    %c0_i32_0 = arith.constant 0 : i32
    %c0_i32_1 = arith.constant 0 : i32
    return %c0_i32, %c0_i32_0 : i32, i32
  }
  func.func @transform_5(%arg0: i32) -> (i32, i32) {
    %c0_i32 = arith.constant 0 : i32
    %c0_i32_0 = arith.constant 0 : i32
    %c0_i32_1 = arith.constant 0 : i32
    return %c0_i32, %c0_i32_0 : i32, i32
  }
  func.func @transform_6(%arg0: i32) -> (i32, i32, i32) {
    %c0_i32 = arith.constant 0 : i32
    %c0_i32_0 = arith.constant 0 : i32
    %c0_i32_1 = arith.constant 0 : i32
    return %arg0, %c0_i32, %c0_i32_0 : i32, i32, i32
  }
}

</mosaic_0001>

<llo_original>
// kernel: tpu_custom_call.1
$region0: #{tpu_custom_call.1}
  #allocation0 [shape = 'u32[]', space=smem, size = 0x4, offset = 0x4, fixed_abs, tag = 'smem constant byte address 0x4 - core index']
  #allocation1 [shape = 'u32[144,128]{1,0:T(1,128)}', space=vmem, size = 0x12000, scoped, tag = 'internal scratch']
  %s0 = inlined_call_operand.vmem [shape: f32[2,8,4], index: 0, kind: input, shape index: {}]
  %s1 = inlined_call_operand.vmem [shape: f32[4,128], index: 1, kind: input, shape index: {}]
  %s2 = inlined_call_operand.vmem [shape: f32[1,128], index: 2, kind: input, shape index: {}]
  %s3 = inlined_call_operand.vmem [shape: f32[8,128], index: 3, kind: input, shape index: {}]
  %s4 = inlined_call_operand.vmem [shape: f32[1,128], index: 4, kind: input, shape index: {}]
  %s5 = inlined_call_operand.vmem [shape: f32[1,128], index: 5, kind: input, shape index: {}]
  %s6 = inlined_call_operand.hbm [shape: f32[2,8,128], index: 6, kind: output, shape index: {}]
  %s7 = sld [smem:[#allocation0]]
  $region57: #{tpu_custom_call.1} parent=0
    _
  %s9 = ssub.s32 1, %s7
  %s10 = scalar_select 0, %s9, %s7
  $region1: #{tpu_custom_call.1} parent=0
    #allocation2 [shape = 'u8[8192]{0}', space=vmem, size = 0x2000, scoped, tag = 'output window, operand 0']
    #allocation3 [shape = 's32[2]{0}', space=sflag, size = 0x8, scoped, tag = 'scoped memory for tpu_custom_call.1']
    %11 = vsyncpa [#allocation3], 0
    %s12 = scalar_lea.sflag [#allocation3], 1
    %13 = vsyncpa %s12, 0
    loop: start=0, step=1, limit=4
    $region2: #{tpu_custom_call.1} parent=1 // loop_pre_header
      _
    $region3: #{tpu_custom_call.1} parent=1 // loop_header
      %s15 = sphi 0, %s19
      %p16 = scmp.ge.s32.totalorder %s15, 4
      %s25 = sphi 0, %s27
      %s28 = sphi 0, %s25
      %s29 = sphi 0, %s28
      %s45 = sphi 0, %s29
      %s49 = sphi 0, %s49
      %s51 = sphi 0, %s49
      %s52 = sphi 0, %s51
      %s66 = sphi 0, %s52
      %s70 = sphi 0, %s70
      %s72 = sphi 0, %s70
      %s73 = sphi 0, %s72
      %s87 = sphi 0, %s73
      %s91 = sphi 0, %s91
      %s93 = sphi 0, %s91
      %s94 = sphi 0, %s93
      %s108 = sphi 0, %s94
      %s112 = sphi 0, %s112
      %s114 = sphi 0, %s112
      %s115 = sphi 0, %s114
      %s129 = sphi 0, %s115
      %s133 = sphi 0, %s133
      %s135 = sphi 0, %s133
      %s136 = sphi 0, %s135
      %s150 = sphi 0, %s136
      %s156 = sphi 0, %s158
      %s159 = sphi 0, %s156
      %s160 = sphi 0, %s159
      %s176 = sphi 0, %s160
    $region4: #{tpu_custom_call.1} parent=1 // loop_header_branch
      %18 = sbr.rel (%p16) target = $region8
    $region5: #{tpu_custom_call.1} parent=1 // loop_body
      %s20 = ssub.s32 %s15, 1
      %s21 = ssub.s32 %s15, 2
      %s22 = sadd.s32 %s15, 1
      %s23 = ssub.s32 %s15, %s22
      %p24 = scmp.eq.s32.totalorder %s23, 0
      %s26 = sadd.s32 %s25, 1
      %s27 = scalar_select %p24, %s25, %s26
      %p30 = pneg %p24
      %p31 = scmp.eq.s32.totalorder %s15, 1
      %p32 = por %p30, %p31
      %p33 = scmp.ne.s32.totalorder %s25, %s28
      %p34 = scmp.eq.s32.totalorder %s15, 0
      %p35 = por %p33, %p34
      %p36 = scmp.ne.s32.totalorder %s25, %s28
      %p37 = scmp.eq.s32.totalorder %s20, 1
      %p38 = por %p36, %p37
      %p39 = scmp.ne.s32.totalorder %s28, %s29
      %p40 = scmp.eq.s32.totalorder %s20, 0
      %p41 = por %p39, %p40
      %p42 = scmp.ne.s32.totalorder %s28, %s29
      %p43 = scmp.eq.s32.totalorder %s21, 1
      %p44 = por %p42, %p43
      %p46 = scmp.ne.s32.totalorder %s29, %s45
      %p47 = scmp.eq.s32.totalorder %s21, 0
      %p48 = por %p46, %p47
      %s50 = sadd.s32 %s49, 1
      %p53 = scmp.eq.s32.totalorder %s15, 1
      %p54 = scmp.ne.s32.totalorder %s49, %s51
      %p55 = scmp.eq.s32.totalorder %s15, 0
      %p56 = por %p54, %p55
      %p57 = scmp.ne.s32.totalorder %s49, %s51
      %p58 = scmp.eq.s32.totalorder %s20, 1
      %p59 = por %p57, %p58
      %p60 = scmp.ne.s32.totalorder %s51, %s52
      %p61 = scmp.eq.s32.totalorder %s20, 0
      %p62 = por %p60, %p61
      %p63 = scmp.ne.s32.totalorder %s51, %s52
      %p64 = scmp.eq.s32.totalorder %s21, 1
      %p65 = por %p63, %p64
      %p67 = scmp.ne.s32.totalorder %s52, %s66
      %p68 = scmp.eq.s32.totalorder %s21, 0
      %p69 = por %p67, %p68
      %s71 = sadd.s32 %s70, 1
      %p74 = scmp.eq.s32.totalorder %s15, 1
      %p75 = scmp.ne.s32.totalorder %s70, %s72
      %p76 = scmp.eq.s32.totalorder %s15, 0
      %p77 = por %p75, %p76
      %p78 = scmp.ne.s32.totalorder %s70, %s72
      %p79 = scmp.eq.s32.totalorder %s20, 1
      %p80 = por %p78, %p79
      %p81 = scmp.ne.s32.totalorder %s72, %s73
      %p82 = scmp.eq.s32.totalorder %s20, 0
      %p83 = por %p81, %p82
      %p84 = scmp.ne.s32.totalorder %s72, %s73
      %p85 = scmp.eq.s32.totalorder %s21, 1
      %p86 = por %p84, %p85
      %p88 = scmp.ne.s32.totalorder %s73, %s87
      %p89 = scmp.eq.s32.totalorder %s21, 0
      %p90 = por %p88, %p89
      %s92 = sadd.s32 %s91, 1
      %p95 = scmp.eq.s32.totalorder %s15, 1
      %p96 = scmp.ne.s32.totalorder %s91, %s93
      %p97 = scmp.eq.s32.totalorder %s15, 0
      %p98 = por %p96, %p97
      %p99 = scmp.ne.s32.totalorder %s91, %s93
      %p100 = scmp.eq.s32.totalorder %s20, 1
      %p101 = por %p99, %p100
      %p102 = scmp.ne.s32.totalorder %s93, %s94
      %p103 = scmp.eq.s32.totalorder %s20, 0
      %p104 = por %p102, %p103
      %p105 = scmp.ne.s32.totalorder %s93, %s94
      %p106 = scmp.eq.s32.totalorder %s21, 1
      %p107 = por %p105, %p106
      %p109 = scmp.ne.s32.totalorder %s94, %s108
      %p110 = scmp.eq.s32.totalorder %s21, 0
      %p111 = por %p109, %p110
      %s113 = sadd.s32 %s112, 1
      %p116 = scmp.eq.s32.totalorder %s15, 1
      %p117 = scmp.ne.s32.totalorder %s112, %s114
      %p118 = scmp.eq.s32.totalorder %s15, 0
      %p119 = por %p117, %p118
      %p120 = scmp.ne.s32.totalorder %s112, %s114
      %p121 = scmp.eq.s32.totalorder %s20, 1
      %p122 = por %p120, %p121
      %p123 = scmp.ne.s32.totalorder %s114, %s115
      %p124 = scmp.eq.s32.totalorder %s20, 0
      %p125 = por %p123, %p124
      %p126 = scmp.ne.s32.totalorder %s114, %s115
      %p127 = scmp.eq.s32.totalorder %s21, 1
      %p128 = por %p126, %p127
      %p130 = scmp.ne.s32.totalorder %s115, %s129
      %p131 = scmp.eq.s32.totalorder %s21, 0
      %p132 = por %p130, %p131
      %s134 = sadd.s32 %s133, 1
      %p137 = scmp.eq.s32.totalorder %s15, 1
      %p138 = scmp.ne.s32.totalorder %s133, %s135
      %p139 = scmp.eq.s32.totalorder %s15, 0
      %p140 = por %p138, %p139
      %p141 = scmp.ne.s32.totalorder %s133, %s135
      %p142 = scmp.eq.s32.totalorder %s20, 1
      %p143 = por %p141, %p142
      %p144 = scmp.ne.s32.totalorder %s135, %s136
      %p145 = scmp.eq.s32.totalorder %s20, 0
      %p146 = por %p144, %p145
      %p147 = scmp.ne.s32.totalorder %s135, %s136
      %p148 = scmp.eq.s32.totalorder %s21, 1
      %p149 = por %p147, %p148
      %p151 = scmp.ne.s32.totalorder %s136, %s150
      %p152 = scmp.eq.s32.totalorder %s21, 0
      %p153 = por %p151, %p152
      %s154 = ssub.s32 %s15, %s22
      %p155 = scmp.eq.s32.totalorder %s154, 0
      %s157 = sadd.s32 %s156, 1
      %s158 = scalar_select %p155, %s156, %s157
      %p161 = pneg %p155
      %p162 = scmp.eq.s32.totalorder %s15, 1
      %p163 = por %p161, %p162
      %p164 = scmp.ne.s32.totalorder %s156, %s159
      %p165 = scmp.eq.s32.totalorder %s15, 0
      %p166 = por %p164, %p165
      %p167 = scmp.ne.s32.totalorder %s156, %s159
      %p168 = scmp.eq.s32.totalorder %s20, 1
      %p169 = por %p167, %p168
      %p170 = scmp.ne.s32.totalorder %s159, %s160
      %p171 = scmp.eq.s32.totalorder %s20, 0
      %p172 = por %p170, %p171
      %p173 = scmp.ne.s32.totalorder %s159, %s160
      %p174 = scmp.eq.s32.totalorder %s21, 1
      %p175 = por %p173, %p174
      %p177 = scmp.ne.s32.totalorder %s160, %s176
      %p178 = scmp.eq.s32.totalorder %s21, 0
      %p179 = por %p177, %p178
      %p180 = scmp.le.s32.totalorder 1, %s15
      %p181 = scmp.lt.s32.totalorder %s15, 3
      %p182 = pnand %p180, %p181
      %p183 = pneg %p182
      // Predicated region
      $region9: #{tpu_custom_call.1} parent=5 // pred_check
        _
      $region10: #{tpu_custom_call.1} parent=5 // pred_check_branch
        %185 = sbr.rel (%p182) target = $region12
      $region11: #{tpu_custom_call.1} parent=5 // pred_region
        %s186 = ssub.s32 %s15, 1
        // Predicated region
        $region13: #{tpu_custom_call.1} parent=11 // pred_check
          %p187 = pneg %p62
        $region14: #{tpu_custom_call.1} parent=11 // pred_check_branch
          %189 = sbr.rel (%p187) target = $region16
        $region15: #{tpu_custom_call.1} parent=11 // pred_region
          _
        $region16: #{tpu_custom_call.1} parent=11 // pred_fallthru
          _
        // Predicated region
        $region17: #{tpu_custom_call.1} parent=11 // pred_check
          %p190 = pneg %p83
        $region18: #{tpu_custom_call.1} parent=11 // pred_check_branch
          %192 = sbr.rel (%p190) target = $region20
        $region19: #{tpu_custom_call.1} parent=11 // pred_region
          _
        $region20: #{tpu_custom_call.1} parent=11 // pred_fallthru
          _
        // Predicated region
        $region21: #{tpu_custom_call.1} parent=11 // pred_check
          %p193 = pneg %p104
        $region22: #{tpu_custom_call.1} parent=11 // pred_check_branch
          %195 = sbr.rel (%p193) target = $region24
        $region23: #{tpu_custom_call.1} parent=11 // pred_region
          _
        $region24: #{tpu_custom_call.1} parent=11 // pred_fallthru
          _
        // Predicated region
        $region25: #{tpu_custom_call.1} parent=11 // pred_check
          %p196 = pneg %p125
        $region26: #{tpu_custom_call.1} parent=11 // pred_check_branch
          %198 = sbr.rel (%p196) target = $region28
        $region27: #{tpu_custom_call.1} parent=11 // pred_region
          _
        $region28: #{tpu_custom_call.1} parent=11 // pred_fallthru
          _
        // Predicated region
        $region29: #{tpu_custom_call.1} parent=11 // pred_check
          %p199 = pneg %p146
        $region30: #{tpu_custom_call.1} parent=11 // pred_check_branch
          %201 = sbr.rel (%p199) target = $region32
        $region31: #{tpu_custom_call.1} parent=11 // pred_region
          _
        $region32: #{tpu_custom_call.1} parent=11 // pred_fallthru
          _
      $region12: #{tpu_custom_call.1} parent=5 // pred_fallthru
        _
      %p202 = scmp.lt.s32.totalorder %s15, 2
      // Predicated region
      $region33: #{tpu_custom_call.1} parent=5 // pred_check
        %p203 = pneg %p202
      $region34: #{tpu_custom_call.1} parent=5 // pred_check_branch
        %205 = sbr.rel (%p203) target = $region36
      $region35: #{tpu_custom_call.1} parent=5 // pred_region
        // Predicated region
        $region37: #{tpu_custom_call.1} parent=35 // pred_check
          %p206 = pneg %p35
        $region38: #{tpu_custom_call.1} parent=35 // pred_check_branch
          %208 = sbr.rel (%p206) target = $region40
        $region39: #{tpu_custom_call.1} parent=35 // pred_region
          %p209 = scmp.lt.s32.totalorder %s15, 1
          %s210 = scalar_select %p209, %s15, 1
          %s211 = smul.addr %s210, 8
          %s212 = scalar_lea.vmem %s0, %s211
        $region40: #{tpu_custom_call.1} parent=35 // pred_fallthru
          _
      $region36: #{tpu_custom_call.1} parent=5 // pred_fallthru
        _
      %p213 = scmp.le.s32.totalorder 1, %s15
      %p214 = scmp.lt.s32.totalorder %s15, 3
      %p215 = pnand %p213, %p214
      %p216 = pneg %p215
      // Predicated region
      $region41: #{tpu_custom_call.1} parent=5 // pred_check
        _
      $region42: #{tpu_custom_call.1} parent=5 // pred_check_branch
        %218 = sbr.rel (%p215) target = $region44
      $region43: #{tpu_custom_call.1} parent=5 // pred_region
        %s219 = ssub.s32 %s15, 1
        %p220 = scmp.lt.s32.totalorder %s20, 1
        %s221 = scalar_select %p220, %s20, 1
        %s222 = smul.addr %s221, 8
        %s223 = scalar_lea.vmem %s0, %s222
        %p224 = pneg %p41
        %p225 = pneg %p38
        %p226 = pneg %p62
        %p227 = pneg %p59
        %p228 = pneg %p83
        %p229 = pneg %p80
        %p230 = pneg %p104
        %p231 = pneg %p101
        %p232 = pneg %p125
        %p233 = pneg %p122
        %p234 = pneg %p146
        %p235 = pneg %p143
        %p236 = pneg %p172
        %p237 = pneg %p169
        %s238 = sand.u32 %s159, 1
        %s239 = scalar_lea.sflag [#allocation3], %s238
        %s240 = sand.u32 %s159, 1
        %s241 = smul.addr %s240, 8
        %s242 = scalar_lea.vmem [#allocation2], %s241
        %p243 = scmp.lt.s32.totalorder %s20, 1
        %s244 = scalar_select %p243, %s20, 1
        %s245 = smul.addr %s244, 8
        %s246 = scalar_lea.vmem %s0, %s245
        %v247 = vld [vmem:[%s246] sm:$0xff]
        %v248 = vld [vmem:[%s1] sm:$0xf]
        %v249 = vld [vmem:[%s2] sm:$0x1]
        %v251 = vlaneseq
        %v252 = vshrl.u32 %v251, 7
        %v253 = vsub.s32 0, %v252
        %v254 = vrot.slane %v249, %v253
        %vm256 = vcmask 31744
        %v258 = vsel %vm256, %v247, 0
        %vm260 = vcmask 1043456
        %v262 = vsel %vm260, %v248, 0
        %264 = vmatprep.subr.mxu0 0.0
        %v265 = vand.u32 %v262, 4294901760
        %266 = vmatpush1.msra.mxu0 %v265
        %267 = vmatprep.subr.mxu0 0.0
        %268 = vmatpush1.msra.mxu0 0.0
        %269 = vmatprep.subr.mxu0 0.0
        %270 = vmatpush1.msra.mxu0 0.0
        %271 = vmatprep.subr.mxu0 0.0
        %272 = vmatpush1.msra.mxu0 0.0
        %273 = vmatprep.subr.mxu0 0.0
        %274 = vmatpush1.msra.mxu0 0.0
        %275 = vmatprep.subr.mxu0 0.0
        %276 = vmatpush1.msra.mxu0 0.0
        %277 = vmatprep.subr.mxu0 0.0
        %278 = vmatpush1.msra.mxu0 0.0
        %279 = vmatprep.subr.mxu0 0.0
        %280 = vmatpush1.msra.mxu0 0.0
        %281 = vmatprep.subr.mxu0 0.0
        %282 = vmatpush1.msra.mxu0 0.0
        %283 = vmatprep.subr.mxu0 0.0
        %284 = vmatpush1.msra.mxu0 0.0
        %285 = vmatprep.subr.mxu0 0.0
        %286 = vmatpush1.msra.mxu0 0.0
        %287 = vmatprep.subr.mxu0 0.0
        %288 = vmatpush1.msra.mxu0 0.0
        %289 = vmatprep.subr.mxu0 0.0
        %290 = vmatpush1.msra.mxu0 0.0
        %291 = vmatprep.subr.mxu0 0.0
        %292 = vmatpush1.msra.mxu0 0.0
        %293 = vmatprep.subr.mxu0 0.0
        %294 = vmatpush1.msra.mxu0 0.0
        %295 = vmatprep.subr.mxu0 0.0
        %296 = vmatpush1.msra.mxu0 0.0
        %297 = vmatprep.subr.mxu0 0.0
        %298 = vmatpush1.msra.mxu0 0.0
        %299 = vmatprep.subr.mxu0 0.0
        %300 = vmatpush1.msra.mxu0 0.0
        %301 = vmatprep.subr.mxu0 0.0
        %302 = vmatpush1.msra.mxu0 0.0
        %303 = vmatprep.subr.mxu0 0.0
        %304 = vmatpush1.msra.mxu0 0.0
        %305 = vmatprep.subr.mxu0 0.0
        %306 = vmatpush1.msra.mxu0 0.0
        %307 = vmatprep.subr.mxu0 0.0
        %308 = vmatpush1.msra.mxu0 0.0
        %309 = vmatprep.subr.mxu0 0.0
        %310 = vmatpush1.msra.mxu0 0.0
        %311 = vmatprep.subr.mxu0 0.0
        %312 = vmatpush1.msra.mxu0 0.0
        %313 = vmatprep.subr.mxu0 0.0
        %314 = vmatpush1.msra.mxu0 0.0
        %315 = vmatprep.subr.mxu0 0.0
        %316 = vmatpush1.msra.mxu0 0.0
        %317 = vmatprep.subr.mxu0 0.0
        %318 = vmatpush1.msra.mxu0 0.0
        %319 = vmatprep.subr.mxu0 0.0
        %320 = vmatpush1.msra.mxu0 0.0
        %321 = vmatprep.subr.mxu0 0.0
        %322 = vmatpush1.msra.mxu0 0.0
        %323 = vmatprep.subr.mxu0 0.0
        %324 = vmatpush1.msra.mxu0 0.0
        %325 = vmatprep.subr.mxu0 0.0
        %326 = vmatpush1.msra.mxu0 0.0
        %327 = vmatprep.subr.mxu0 0.0
        %328 = vmatpush1.msra.mxu0 0.0
        %329 = vmatprep.mubr.f32.mxu0 0.0
        %v330 = vand.u32 %v258, 4294901760
        %v331 = vsub.f32 %v258, %v330
        %v332 = vand.u32 %v331, 4294901760
        %v333 = vsub.f32 %v331, %v332
        %v334 = vand.u32 %v333, 4294901760
        %335 = vmatmul.mubr.f32.gmra.mrb[0].mxu0 %v334
        %v336 = vpop.f32.mrb[0].mxu0
        %v337 = vadd.f32 %v254, %v336
        %v338 = vpop.f32.mrb[0].mxu0
        %339 = vdwg.mxu0
        %340 = vmatprep.subr.mxu0 0.0
        %v341 = vand.u32 %v262, 4294901760
        %v342 = vsub.f32 %v262, %v341
        %v343 = vand.u32 %v342, 4294901760
        %v344 = vsub.f32 %v342, %v343
        %v345 = vand.u32 %v344, 4294901760
        %346 = vmatpush1.msra.mxu0 %v345
        %347 = vmatprep.subr.mxu0 0.0
        %348 = vmatpush1.msra.mxu0 0.0
        %349 = vmatprep.subr.mxu0 0.0
        %350 = vmatpush1.msra.mxu0 0.0
        %351 = vmatprep.subr.mxu0 0.0
        %352 = vmatpush1.msra.mxu0 0.0
        %353 = vmatprep.subr.mxu0 0.0
        %354 = vmatpush1.msra.mxu0 0.0
        %355 = vmatprep.subr.mxu0 0.0
        %356 = vmatpush1.msra.mxu0 0.0
        %357 = vmatprep.subr.mxu0 0.0
        %358 = vmatpush1.msra.mxu0 0.0
        %359 = vmatprep.subr.mxu0 0.0
        %360 = vmatpush1.msra.mxu0 0.0
        %361 = vmatprep.subr.mxu0 0.0
        %362 = vmatpush1.msra.mxu0 0.0
        %363 = vmatprep.subr.mxu0 0.0
        %364 = vmatpush1.msra.mxu0 0.0
        %365 = vmatprep.subr.mxu0 0.0
        %366 = vmatpush1.msra.mxu0 0.0
        %367 = vmatprep.subr.mxu0 0.0
        %368 = vmatpush1.msra.mxu0 0.0
        %369 = vmatprep.subr.mxu0 0.0
        %370 = vmatpush1.msra.mxu0 0.0
        %371 = vmatprep.subr.mxu0 0.0
        %372 = vmatpush1.msra.mxu0 0.0
        %373 = vmatprep.subr.mxu0 0.0
        %374 = vmatpush1.msra.mxu0 0.0
        %375 = vmatprep.subr.mxu0 0.0
        %376 = vmatpush1.msra.mxu0 0.0
        %377 = vmatprep.subr.mxu0 0.0
        %378 = vmatpush1.msra.mxu0 0.0
        %379 = vmatprep.subr.mxu0 0.0
        %380 = vmatpush1.msra.mxu0 0.0
        %381 = vmatprep.subr.mxu0 0.0
        %382 = vmatpush1.msra.mxu0 0.0
        %383 = vmatprep.subr.mxu0 0.0
        %384 = vmatpush1.msra.mxu0 0.0
        %385 = vmatprep.subr.mxu0 0.0
        %386 = vmatpush1.msra.mxu0 0.0
        %387 = vmatprep.subr.mxu0 0.0
        %388 = vmatpush1.msra.mxu0 0.0
        %389 = vmatprep.subr.mxu0 0.0
        %390 = vmatpush1.msra.mxu0 0.0
        %391 = vmatprep.subr.mxu0 0.0
        %392 = vmatpush1.msra.mxu0 0.0
        %393 = vmatprep.subr.mxu0 0.0
        %394 = vmatpush1.msra.mxu0 0.0
        %395 = vmatprep.subr.mxu0 0.0
        %396 = vmatpush1.msra.mxu0 0.0
        %397 = vmatprep.subr.mxu0 0.0
        %398 = vmatpush1.msra.mxu0 0.0
        %399 = vmatprep.subr.mxu0 0.0
        %400 = vmatpush1.msra.mxu0 0.0
        %401 = vmatprep.subr.mxu0 0.0
        %402 = vmatpush1.msra.mxu0 0.0
        %403 = vmatprep.subr.mxu0 0.0
        %404 = vmatpush1.msra.mxu0 0.0
        %405 = vmatprep.subr.mxu0 0.0
        %406 = vmatpush1.msra.mxu0 0.0
        %407 = vmatprep.subr.mxu0 0.0
        %408 = vmatpush1.msra.mxu0 0.0
        %409 = vmatprep.mubr.f32.mxu0 0.0
        %v410 = vand.u32 %v258, 4294901760
        %411 = vmatmul.mubr.f32.gmra.mrb[0].mxu0 %v410
        %v412 = vpop.f32.mrb[0].mxu0
        %v413 = vadd.f32 %v337, %v412
        %v414 = vpop.f32.mrb[0].mxu0
        %415 = vdwg.mxu0
        %416 = vmatprep.subr.mxu0 0.0
        %v417 = vand.u32 %v262, 4294901760
        %v418 = vsub.f32 %v262, %v417
        %419 = vmatpush1.msra.mxu0 %v418
        %420 = vmatprep.subr.mxu0 0.0
        %421 = vmatpush1.msra.mxu0 0.0
        %422 = vmatprep.subr.mxu0 0.0
        %423 = vmatpush1.msra.mxu0 0.0
        %424 = vmatprep.subr.mxu0 0.0
        %425 = vmatpush1.msra.mxu0 0.0
        %426 = vmatprep.subr.mxu0 0.0
        %427 = vmatpush1.msra.mxu0 0.0
        %428 = vmatprep.subr.mxu0 0.0
        %429 = vmatpush1.msra.mxu0 0.0
        %430 = vmatprep.subr.mxu0 0.0
        %431 = vmatpush1.msra.mxu0 0.0
        %432 = vmatprep.subr.mxu0 0.0
        %433 = vmatpush1.msra.mxu0 0.0
        %434 = vmatprep.subr.mxu0 0.0
        %435 = vmatpush1.msra.mxu0 0.0
        %436 = vmatprep.subr.mxu0 0.0
        %437 = vmatpush1.msra.mxu0 0.0
        %438 = vmatprep.subr.mxu0 0.0
        %439 = vmatpush1.msra.mxu0 0.0
        %440 = vmatprep.subr.mxu0 0.0
        %441 = vmatpush1.msra.mxu0 0.0
        %442 = vmatprep.subr.mxu0 0.0
        %443 = vmatpush1.msra.mxu0 0.0
        %444 = vmatprep.subr.mxu0 0.0
        %445 = vmatpush1.msra.mxu0 0.0
        %446 = vmatprep.subr.mxu0 0.0
        %447 = vmatpush1.msra.mxu0 0.0
        %448 = vmatprep.subr.mxu0 0.0
        %449 = vmatpush1.msra.mxu0 0.0
        %450 = vmatprep.subr.mxu0 0.0
        %451 = vmatpush1.msra.mxu0 0.0
        %452 = vmatprep.subr.mxu0 0.0
        %453 = vmatpush1.msra.mxu0 0.0
        %454 = vmatprep.subr.mxu0 0.0
        %455 = vmatpush1.msra.mxu0 0.0
        %456 = vmatprep.subr.mxu0 0.0
        %457 = vmatpush1.msra.mxu0 0.0
        %458 = vmatprep.subr.mxu0 0.0
        %459 = vmatpush1.msra.mxu0 0.0
        %460 = vmatprep.subr.mxu0 0.0
        %461 = vmatpush1.msra.mxu0 0.0
        %462 = vmatprep.subr.mxu0 0.0
        %463 = vmatpush1.msra.mxu0 0.0
        %464 = vmatprep.subr.mxu0 0.0
        %465 = vmatpush1.msra.mxu0 0.0
        %466 = vmatprep.subr.mxu0 0.0
        %467 = vmatpush1.msra.mxu0 0.0
        %468 = vmatprep.subr.mxu0 0.0
        %469 = vmatpush1.msra.mxu0 0.0
        %470 = vmatprep.subr.mxu0 0.0
        %471 = vmatpush1.msra.mxu0 0.0
        %472 = vmatprep.subr.mxu0 0.0
        %473 = vmatpush1.msra.mxu0 0.0
        %474 = vmatprep.subr.mxu0 0.0
        %475 = vmatpush1.msra.mxu0 0.0
        %476 = vmatprep.subr.mxu0 0.0
        %477 = vmatpush1.msra.mxu0 0.0
        %478 = vmatprep.subr.mxu0 0.0
        %479 = vmatpush1.msra.mxu0 0.0
        %480 = vmatprep.subr.mxu0 0.0
        %481 = vmatpush1.msra.mxu0 0.0
        %482 = vmatprep.mubr.f32.mxu0 0.0
        %v483 = vand.u32 %v258, 4294901760
        %v484 = vsub.f32 %v258, %v483
        %485 = vmatmul.mubr.f32.gmra.mrb[0].mxu0 %v484
        %v486 = vpop.f32.mrb[0].mxu0
        %v487 = vadd.f32 %v413, %v486
        %v488 = vpop.f32.mrb[0].mxu0
        %489 = vdwg.mxu0
        %490 = vmatprep.subr.mxu0 0.0
        %v491 = vand.u32 %v262, 4294901760
        %492 = vmatpush1.msra.mxu0 %v491
        %493 = vmatprep.subr.mxu0 0.0
        %494 = vmatpush1.msra.mxu0 0.0
        %495 = vmatprep.subr.mxu0 0.0
        %496 = vmatpush1.msra.mxu0 0.0
        %497 = vmatprep.subr.mxu0 0.0
        %498 = vmatpush1.msra.mxu0 0.0
        %499 = vmatprep.subr.mxu0 0.0
        %500 = vmatpush1.msra.mxu0 0.0
        %501 = vmatprep.subr.mxu0 0.0
        %502 = vmatpush1.msra.mxu0 0.0
        %503 = vmatprep.subr.mxu0 0.0
        %504 = vmatpush1.msra.mxu0 0.0
        %505 = vmatprep.subr.mxu0 0.0
        %506 = vmatpush1.msra.mxu0 0.0
        %507 = vmatprep.subr.mxu0 0.0
        %508 = vmatpush1.msra.mxu0 0.0
        %509 = vmatprep.subr.mxu0 0.0
        %510 = vmatpush1.msra.mxu0 0.0
        %511 = vmatprep.subr.mxu0 0.0
        %512 = vmatpush1.msra.mxu0 0.0
        %513 = vmatprep.subr.mxu0 0.0
        %514 = vmatpush1.msra.mxu0 0.0
        %515 = vmatprep.subr.mxu0 0.0
        %516 = vmatpush1.msra.mxu0 0.0
        %517 = vmatprep.subr.mxu0 0.0
        %518 = vmatpush1.msra.mxu0 0.0
        %519 = vmatprep.subr.mxu0 0.0
        %520 = vmatpush1.msra.mxu0 0.0
        %521 = vmatprep.subr.mxu0 0.0
        %522 = vmatpush1.msra.mxu0 0.0
        %523 = vmatprep.subr.mxu0 0.0
        %524 = vmatpush1.msra.mxu0 0.0
        %525 = vmatprep.subr.mxu0 0.0
        %526 = vmatpush1.msra.mxu0 0.0
        %527 = vmatprep.subr.mxu0 0.0
        %528 = vmatpush1.msra.mxu0 0.0
        %529 = vmatprep.subr.mxu0 0.0
        %530 = vmatpush1.msra.mxu0 0.0
        %531 = vmatprep.subr.mxu0 0.0
        %532 = vmatpush1.msra.mxu0 0.0
        %533 = vmatprep.subr.mxu0 0.0
        %534 = vmatpush1.msra.mxu0 0.0
        %535 = vmatprep.subr.mxu0 0.0
        %536 = vmatpush1.msra.mxu0 0.0
        %537 = vmatprep.subr.mxu0 0.0
        %538 = vmatpush1.msra.mxu0 0.0
        %539 = vmatprep.subr.mxu0 0.0
        %540 = vmatpush1.msra.mxu0 0.0
        %541 = vmatprep.subr.mxu0 0.0
        %542 = vmatpush1.msra.mxu0 0.0
        %543 = vmatprep.subr.mxu0 0.0
        %544 = vmatpush1.msra.mxu0 0.0
        %545 = vmatprep.subr.mxu0 0.0
        %546 = vmatpush1.msra.mxu0 0.0
        %547 = vmatprep.subr.mxu0 0.0
        %548 = vmatpush1.msra.mxu0 0.0
        %549 = vmatprep.subr.mxu0 0.0
        %550 = vmatpush1.msra.mxu0 0.0
        %551 = vmatprep.subr.mxu0 0.0
        %552 = vmatpush1.msra.mxu0 0.0
        %553 = vmatprep.subr.mxu0 0.0
        %554 = vmatpush1.msra.mxu0 0.0
        %555 = vmatprep.mubr.f32.mxu0 0.0
        %v556 = vand.u32 %v258, 4294901760
        %v557 = vsub.f32 %v258, %v556
        %v558 = vand.u32 %v557, 4294901760
        %559 = vmatmul.mubr.f32.gmra.mrb[0].mxu0 %v558
        %v560 = vpop.f32.mrb[0].mxu0
        %v561 = vadd.f32 %v487, %v560
        %v562 = vpop.f32.mrb[0].mxu0
        %563 = vdwg.mxu0
        %564 = vmatprep.subr.mxu0 0.0
        %v565 = vand.u32 %v262, 4294901760
        %v566 = vsub.f32 %v262, %v565
        %v567 = vand.u32 %v566, 4294901760
        %568 = vmatpush1.msra.mxu0 %v567
        %569 = vmatprep.subr.mxu0 0.0
        %570 = vmatpush1.msra.mxu0 0.0
        %571 = vmatprep.subr.mxu0 0.0
        %572 = vmatpush1.msra.mxu0 0.0
        %573 = vmatprep.subr.mxu0 0.0
        %574 = vmatpush1.msra.mxu0 0.0
        %575 = vmatprep.subr.mxu0 0.0
        %576 = vmatpush1.msra.mxu0 0.0
        %577 = vmatprep.subr.mxu0 0.0
        %578 = vmatpush1.msra.mxu0 0.0
        %579 = vmatprep.subr.mxu0 0.0
        %580 = vmatpush1.msra.mxu0 0.0
        %581 = vmatprep.subr.mxu0 0.0
        %582 = vmatpush1.msra.mxu0 0.0
        %583 = vmatprep.subr.mxu0 0.0
        %584 = vmatpush1.msra.mxu0 0.0
        %585 = vmatprep.subr.mxu0 0.0
        %586 = vmatpush1.msra.mxu0 0.0
        %587 = vmatprep.subr.mxu0 0.0
        %588 = vmatpush1.msra.mxu0 0.0
        %589 = vmatprep.subr.mxu0 0.0
        %590 = vmatpush1.msra.mxu0 0.0
        %591 = vmatprep.subr.mxu0 0.0
        %592 = vmatpush1.msra.mxu0 0.0
        %593 = vmatprep.subr.mxu0 0.0
        %594 = vmatpush1.msra.mxu0 0.0
        %595 = vmatprep.subr.mxu0 0.0
        %596 = vmatpush1.msra.mxu0 0.0
        %597 = vmatprep.subr.mxu0 0.0
        %598 = vmatpush1.msra.mxu0 0.0
        %599 = vmatprep.subr.mxu0 0.0
        %600 = vmatpush1.msra.mxu0 0.0
        %601 = vmatprep.subr.mxu0 0.0
        %602 = vmatpush1.msra.mxu0 0.0
        %603 = vmatprep.subr.mxu0 0.0
        %604 = vmatpush1.msra.mxu0 0.0
        %605 = vmatprep.subr.mxu0 0.0
        %606 = vmatpush1.msra.mxu0 0.0
        %607 = vmatprep.subr.mxu0 0.0
        %608 = vmatpush1.msra.mxu0 0.0
        %609 = vmatprep.subr.mxu0 0.0
        %610 = vmatpush1.msra.mxu0 0.0
        %611 = vmatprep.subr.mxu0 0.0
        %612 = vmatpush1.msra.mxu0 0.0
        %613 = vmatprep.subr.mxu0 0.0
        %614 = vmatpush1.msra.mxu0 0.0
        %615 = vmatprep.subr.mxu0 0.0
        %616 = vmatpush1.msra.mxu0 0.0
        %617 = vmatprep.subr.mxu0 0.0
        %618 = vmatpush1.msra.mxu0 0.0
        %619 = vmatprep.subr.mxu0 0.0
        %620 = vmatpush1.msra.mxu0 0.0
        %621 = vmatprep.subr.mxu0 0.0
        %622 = vmatpush1.msra.mxu0 0.0
        %623 = vmatprep.subr.mxu0 0.0
        %624 = vmatpush1.msra.mxu0 0.0
        %625 = vmatprep.subr.mxu0 0.0
        %626 = vmatpush1.msra.mxu0 0.0
        %627 = vmatprep.subr.mxu0 0.0
        %628 = vmatpush1.msra.mxu0 0.0
        %629 = vmatprep.subr.mxu0 0.0
        %630 = vmatpush1.msra.mxu0 0.0
        %631 = vmatprep.mubr.f32.mxu0 0.0
        %v632 = vand.u32 %v258, 4294901760
        %633 = vmatmul.mubr.f32.gmra.mrb[0].mxu0 %v632
        %v634 = vpop.f32.mrb[0].mxu0
        %v635 = vadd.f32 %v561, %v634
        %v636 = vpop.f32.mrb[0].mxu0
        %637 = vdwg.mxu0
        %638 = vmatprep.subr.mxu0 0.0
        %v639 = vand.u32 %v262, 4294901760
        %640 = vmatpush1.msra.mxu0 %v639
        %641 = vmatprep.subr.mxu0 0.0
        %642 = vmatpush1.msra.mxu0 0.0
        %643 = vmatprep.subr.mxu0 0.0
        %644 = vmatpush1.msra.mxu0 0.0
        %645 = vmatprep.subr.mxu0 0.0
        %646 = vmatpush1.msra.mxu0 0.0
        %647 = vmatprep.subr.mxu0 0.0
        %648 = vmatpush1.msra.mxu0 0.0
        %649 = vmatprep.subr.mxu0 0.0
        %650 = vmatpush1.msra.mxu0 0.0
        %651 = vmatprep.subr.mxu0 0.0
        %652 = vmatpush1.msra.mxu0 0.0
        %653 = vmatprep.subr.mxu0 0.0
        %654 = vmatpush1.msra.mxu0 0.0
        %655 = vmatprep.subr.mxu0 0.0
        %656 = vmatpush1.msra.mxu0 0.0
        %657 = vmatprep.subr.mxu0 0.0
        %658 = vmatpush1.msra.mxu0 0.0
        %659 = vmatprep.subr.mxu0 0.0
        %660 = vmatpush1.msra.mxu0 0.0
        %661 = vmatprep.subr.mxu0 0.0
        %662 = vmatpush1.msra.mxu0 0.0
        %663 = vmatprep.subr.mxu0 0.0
        %664 = vmatpush1.msra.mxu0 0.0
        %665 = vmatprep.subr.mxu0 0.0
        %666 = vmatpush1.msra.mxu0 0.0
        %667 = vmatprep.subr.mxu0 0.0
        %668 = vmatpush1.msra.mxu0 0.0
        %669 = vmatprep.subr.mxu0 0.0
        %670 = vmatpush1.msra.mxu0 0.0
        %671 = vmatprep.subr.mxu0 0.0
        %672 = vmatpush1.msra.mxu0 0.0
        %673 = vmatprep.subr.mxu0 0.0
        %674 = vmatpush1.msra.mxu0 0.0
        %675 = vmatprep.subr.mxu0 0.0
        %676 = vmatpush1.msra.mxu0 0.0
        %677 = vmatprep.subr.mxu0 0.0
        %678 = vmatpush1.msra.mxu0 0.0
        %679 = vmatprep.subr.mxu0 0.0
        %680 = vmatpush1.msra.mxu0 0.0
        %681 = vmatprep.subr.mxu0 0.0
        %682 = vmatpush1.msra.mxu0 0.0
        %683 = vmatprep.subr.mxu0 0.0
        %684 = vmatpush1.msra.mxu0 0.0
        %685 = vmatprep.subr.mxu0 0.0
        %686 = vmatpush1.msra.mxu0 0.0
        %687 = vmatprep.subr.mxu0 0.0
        %688 = vmatpush1.msra.mxu0 0.0
        %689 = vmatprep.subr.mxu0 0.0
        %690 = vmatpush1.msra.mxu0 0.0
        %691 = vmatprep.subr.mxu0 0.0
        %692 = vmatpush1.msra.mxu0 0.0
        %693 = vmatprep.subr.mxu0 0.0
        %694 = vmatpush1.msra.mxu0 0.0
        %695 = vmatprep.subr.mxu0 0.0
        %696 = vmatpush1.msra.mxu0 0.0
        %697 = vmatprep.subr.mxu0 0.0
        %698 = vmatpush1.msra.mxu0 0.0
        %699 = vmatprep.subr.mxu0 0.0
        %700 = vmatpush1.msra.mxu0 0.0
        %701 = vmatprep.subr.mxu0 0.0
        %702 = vmatpush1.msra.mxu0 0.0
        %703 = vmatprep.mubr.f32.mxu0 0.0
        %v704 = vand.u32 %v258, 4294901760
        %705 = vmatmul.mubr.f32.gmra.mrb[0].mxu0 %v704
        %v706 = vpop.f32.mrb[0].mxu0
        %v707 = vadd.f32 %v635, %v706
        %v708 = vpop.f32.mrb[0].mxu0
        %709 = vdwg.mxu0
        %v710 = vld [vmem:[%s3] sm:$0xff]
        %v711 = vadd.f32 %v707, %v710
        %v712 = vld [vmem:[%s4] sm:$0x1]
        %v713 = vld [vmem:[%s5] sm:$0x1]
        %714 = vadd.xlane.f32.xlu0 %v711
        %v715 = vpop.xlane.xlu0 %714
        %v716 = vrcp.pop 128.0
        %v717 = vmul.f32 %v715, %v716
        %v718 = vsub.f32 %v711, %v717
        %v719 = vmul.f32 %v718, %v718
        %720 = vadd.xlane.f32.xlu0 %v719
        %v721 = vpop.xlane.xlu0 %720
        %v722 = vmul.f32 %v721, %v716
        %v723 = vadd.f32 %v722, 1e-06
        %v724 = vrsqrt.pop %v723
        %v725 = vmul.f32 %v718, %v724
        %v727 = vlaneseq
        %v728 = vshrl.u32 %v727, 7
        %v729 = vsub.s32 0, %v728
        %v730 = vrot.slane %v712, %v729
        %v732 = vmul.f32 %v725, %v730
        %v734 = vlaneseq
        %v735 = vshrl.u32 %v734, 7
        %v736 = vsub.s32 0, %v735
        %v737 = vrot.slane %v713, %v736
        %v739 = vadd.f32 %v732, %v737
        %740 = vst [vmem:[%s242] sm:$0xff] %v739
        %s741 = sand.u32 %s159, 1
        %s742 = scalar_lea.sflag [#allocation3], %s741
        %s743 = sand.u32 %s159, 1
        %s744 = smul.addr %s743, 8
        %s745 = scalar_lea.vmem [#allocation2], %s744
        // Predicated region
        $region45: #{tpu_custom_call.1} parent=43 // pred_check
          %p746 = pneg %p169
        $region46: #{tpu_custom_call.1} parent=43 // pred_check_branch
          %748 = sbr.rel (%p746) target = $region48
        $region47: #{tpu_custom_call.1} parent=43 // pred_region
          %s750 = ssub.s32 128, 128
          %751 = vsyncadd %s742, %s750
          %s752 = smul.addr %s20, 128
          %s753 = scalar_lea.hbm %s6, %s752
          %s755 = sshll.u32 %s745, 4
          %s756 = int_to_ptr.vmem [resolvable:$true] %s755
          %758 = dma.vmem_to_hbm [thread:$0]  %s756, 128, %s753, %s742
        $region48: #{tpu_custom_call.1} parent=43 // pred_fallthru
          _
      $region44: #{tpu_custom_call.1} parent=5 // pred_fallthru
        _
      %p759 = scmp.le.s32.totalorder 2, %s15
      // Predicated region
      $region49: #{tpu_custom_call.1} parent=5 // pred_check
        %p760 = pneg %p759
      $region50: #{tpu_custom_call.1} parent=5 // pred_check_branch
        %762 = sbr.rel (%p760) target = $region52
      $region51: #{tpu_custom_call.1} parent=5 // pred_region
        %s763 = ssub.s32 %s15, 2
        // Predicated region
        $region53: #{tpu_custom_call.1} parent=51 // pred_check
          %p764 = pneg %p175
        $region54: #{tpu_custom_call.1} parent=51 // pred_check_branch
          %766 = sbr.rel (%p764) target = $region56
        $region55: #{tpu_custom_call.1} parent=51 // pred_region
          %s767 = sand.u32 %s160, 1
          %s768 = scalar_lea.sflag [#allocation3], %s767
          %s769 = sand.u32 %s160, 1
          %s770 = smul.addr %s769, 8
          %s771 = scalar_lea.vmem [#allocation2], %s770
          %772 = dma.done %s768, 128
        $region56: #{tpu_custom_call.1} parent=51 // pred_fallthru
          _
      $region52: #{tpu_custom_call.1} parent=5 // pred_fallthru
        _
    $region6: #{tpu_custom_call.1} parent=1 // loop_footer
      %s19 = sadd.s32 1, %s15
    $region7: #{tpu_custom_call.1} parent=1 // loop_footer_branch
      %14 = sbr.rel target = $region3
    $region8: #{tpu_custom_call.1} parent=1 // loop_exit
      _
    %773 = vsyncpa [#allocation3], 1
    %s774 = scalar_lea.sflag [#allocation3], 1
    %775 = vsyncpa %s774, 1

</llo_original>
